<compile_context>
chip_gen: v5e
topology: v5e:2x2
jax: 0.10.0
libtpu: 0.0.40
codegen_flags: <defaults>
</compile_context>

<pallas_src>
import functools
import math

import jax
import jax.numpy as jnp
from jax.experimental import pallas as pl
from jax.experimental.pallas import tpu as pltpu


def _round_up(v, m):
    return ((v + m - 1) // m) * m


# --------------------------------------------------------------------------- #
# Kernels
# --------------------------------------------------------------------------- #
def _fused_kernel(x_ref, w_ref, b_ref, o_ref):
    """Collapsed-K path: one full-K MXU dot per (tm, tn) output tile."""
    y = jnp.dot(x_ref[...], w_ref[...], preferred_element_type=jnp.float32)
    y = y + b_ref[...].astype(jnp.float32)          # broadcast (1, tn)
    # BatchNorm1d skipped (use_norm=False -> Identity); Dropout(p=0) is identity.
    o_ref[...] = jnp.maximum(y, 0.0).astype(o_ref.dtype)


def _ksplit_kernel(x_ref, w_ref, b_ref, o_ref, acc_ref):
    """Fallback for very large in_dim: K is the last (reduction) grid axis."""
    k = pl.program_id(2)

    @pl.when(k == 0)
    def _init():
        acc_ref[...] = jnp.zeros_like(acc_ref)

    acc_ref[...] += jnp.dot(
        x_ref[...], w_ref[...], preferred_element_type=jnp.float32
    )

    @pl.when(k == pl.num_programs(2) - 1)
    def _finalize():
        y = acc_ref[...] + b_ref[...].astype(jnp.float32)
        o_ref[...] = jnp.maximum(y, 0.0).astype(o_ref.dtype)


# --------------------------------------------------------------------------- #
# Tile selection helpers (static / trace-time)
# --------------------------------------------------------------------------- #
def _choose_m_tiling(B, tile_m, sublane):
    """Pick (tm, Bp). Prefer: no host-side padding of x; >=2 M blocks when possible."""
    if B <= tile_m:
        if B >= 2 * sublane and B % sublane == 0:
            # Try to split into a few equal, sublane-aligned blocks without padding
            # (keeps both v7x TensorCores busy even when N has a single block).
            for nb in range(2, 9):
                if B % nb == 0 and (B // nb) % sublane == 0 and (B // nb) >= sublane:
                    return B // nb, B
        # Single full-dim block (legal even if B is not a sublane multiple; no pad).
        return B, B
    # Large B: pick the tile that minimizes padding (e.g. B=300, tile_m=256 -> tm=152).
    nb = math.ceil(B / tile_m)
    tm = _round_up(math.ceil(B / nb), sublane)
    return tm, _round_up(B, tm)


def _choose_n_tiling(out_dim, tile_n):
    """Pick (tn, Np). Np is always a multiple of 128 -> lane-dense unmasked stores."""
    if out_dim <= tile_n:
        Np = _round_up(out_dim, 128)
        # Split into two 128-multiple blocks when possible (megacore on v7x).
        tn = Np // 2 if (Np >= 256 and Np % 256 == 0) else Np
        return tn, Np
    assert tile_n % 128 == 0, "tile_n must be a multiple of 128 when out_dim > tile_n"
    return tile_n, _round_up(out_dim, tile_n)


def _vmem_limit(working_set_bytes):
    # Always at least the 32 MiB scoped default (lifts v5e's 16 MiB default when
    # larger tiles are requested); never above v7x's 64 MiB physical VMEM.
    return int(min(64 * 1024 * 1024, max(32 * 1024 * 1024, 2 * working_set_bytes)))


# --------------------------------------------------------------------------- #
# Public wrapper
# --------------------------------------------------------------------------- #
@functools.partial(
    jax.jit,
    static_argnames=("tile_m", "tile_n", "tile_k", "compute_dtype", "max_fused_k"),
)
def preprocess_layer(x, w, b, *, tile_m=512, tile_n=512, tile_k=1024,
                     compute_dtype=None, max_fused_k=None):
    """x: (B, in_dim), w: (in_dim, out_dim), b: (out_dim,). Returns relu(x@w + b)."""
    B, in_dim = x.shape
    k_dim, out_dim = w.shape
    assert k_dim == in_dim, "weight shape must be (in_dim, out_dim)"

    out_dtype = x.dtype
    if compute_dtype is not None:        # e.g. jnp.bfloat16: halves x/w DMA, bf16 MXU
        x = x.astype(compute_dtype)
        w = w.astype(compute_dtype)

    in_sz = jnp.dtype(x.dtype).itemsize
    out_sz = jnp.dtype(out_dtype).itemsize
    sublane = 8 * (4 // in_sz)           # 8 for f32, 16 for bf16 (packed sublanes)

    if max_fused_k is None:
        max_fused_k = 8192 // in_sz      # ~2K f32, ~4K bf16: full-K block fits VMEM
    fused = in_dim <= max_fused_k

    # --- tile / padded-shape selection (all static) ---
    tm, Bp = _choose_m_tiling(B, tile_m, sublane)
    tn, Np = _choose_n_tiling(out_dim, tile_n)
    if fused:
        tk, Kp = in_dim, in_dim          # full-K block: no K padding needed
    else:
        if in_dim > tile_k:
            assert tile_k % 128 == 0, "tile_k must be a multiple of 128 when split"
            tk = tile_k
        else:
            tk = in_dim
        Kp = _round_up(in_dim, tk)

    # --- pad (zeros contribute nothing to the dot; padded rows/cols sliced off) ---
    pad_m, pad_k, pad_n = Bp - B, Kp - in_dim, Np - out_dim
    xp = jnp.pad(x, ((0, pad_m), (0, pad_k))) if (pad_m or pad_k) else x
    wp = jnp.pad(w, ((0, pad_k), (0, pad_n))) if (pad_k or pad_n) else w
    b2 = b.reshape(1, out_dim).astype(jnp.float32)
    if pad_n:
        b2 = jnp.pad(b2, ((0, 0), (0, pad_n)))

    cost = pl.CostEstimate(
        flops=2 * Bp * Kp * Np,
        transcendentals=0,
        bytes_accessed=(Bp * Kp * in_sz + Kp * Np * in_sz + Np * 4 + Bp * Np * out_sz),
    )

    if fused:
        # Grid = (N, M): weight panel (Kp, tn) indexed only by the outer axis, so it
        # is DMA'd once per column panel and reused across every M block.
        grid = (Np // tn, Bp // tm)
        working_set = 2 * (tm * Kp * in_sz + Kp * tn * in_sz + tn * 4 + tm * tn * out_sz)
        out = pl.pallas_call(
            _fused_kernel,
            out_shape=jax.ShapeDtypeStruct((Bp, Np), out_dtype),
            grid_spec=pltpu.PrefetchScalarGridSpec(
                num_scalar_prefetch=0,
                grid=grid,
                in_specs=[
                    pl.BlockSpec((tm, Kp), lambda j, i: (i, 0)),   # x row panel
                    pl.BlockSpec((Kp, tn), lambda j, i: (0, j)),   # w column panel (resident over M)
                    pl.BlockSpec((1, tn), lambda j, i: (0, j)),    # bias tile
                ],
                out_specs=pl.BlockSpec((tm, tn), lambda j, i: (i, j)),
            ),
            compiler_params=pltpu.CompilerParams(
                dimension_semantics=("parallel", "parallel"),
                vmem_limit_bytes=_vmem_limit(working_set),
            ),
            cost_estimate=cost,
        )(xp, wp, b2)
    else:
        # Fallback for very large in_dim: K-split with f32 VMEM accumulator.
        grid = (Bp // tm, Np // tn, Kp // tk)
        working_set = 2 * (tm * tk * in_sz + tk * tn * in_sz + tn * 4
                           + tm * tn * out_sz) + tm * tn * 4
        out = pl.pallas_call(
            _ksplit_kernel,
            out_shape=jax.ShapeDtypeStruct((Bp, Np), out_dtype),
            grid_spec=pltpu.PrefetchScalarGridSpec(
                num_scalar_prefetch=0,
                grid=grid,
                in_specs=[
                    pl.BlockSpec((tm, tk), lambda i, j, k: (i, k)),
                    pl.BlockSpec((tk, tn), lambda i, j, k: (k, j)),
                    pl.BlockSpec((1, tn), lambda i, j, k: (0, j)),
                ],
                out_specs=pl.BlockSpec((tm, tn), lambda i, j, k: (i, j)),
                scratch_shapes=[pltpu.VMEM((tm, tn), jnp.float32)],
            ),
            compiler_params=pltpu.CompilerParams(
                dimension_semantics=("parallel", "parallel", "arbitrary"),
                vmem_limit_bytes=_vmem_limit(working_set),
            ),
            cost_estimate=cost,
        )(xp, wp, b2)

    if Bp != B or Np != out_dim:
        out = out[:B, :out_dim]
    return out


if __name__ == "__main__":
    # --- check 1: small demo shapes consistent with the module's forward (f32) ---
    B, IN_DIM, OUT_DIM = 16, 32, 32
    key = jax.random.PRNGKey(0)
    kx, kw, kb = jax.random.split(key, 3)
    x = jax.random.normal(kx, (B, IN_DIM), dtype=jnp.float32)
    w = jax.random.normal(kw, (IN_DIM, OUT_DIM), dtype=jnp.float32) * 0.1
    b = jax.random.normal(kb, (OUT_DIM,), dtype=jnp.float32) * 0.1

    out = jax.block_until_ready(preprocess_layer(x, w, b))
    ref = jnp.maximum(x @ w + b, 0.0)
    assert out.shape == (B, OUT_DIM)
    assert jnp.allclose(out, ref, atol=1e-5, rtol=1e-5), "mismatch vs reference (f32)"

    # --- check 2: multi-N-block + N-padded path with bf16 compute, no x padding ---
    B2, IN2, OUT2 = 300, 192, 160
    k2x, k2w, k2b = jax.random.split(jax.random.PRNGKey(1), 3)
    x2 = jax.random.normal(k2x, (B2, IN2), dtype=jnp.float32)
    w2 = jax.random.normal(k2w, (IN2, OUT2), dtype=jnp.float32) * 0.05
    b2 = jax.random.normal(k2b, (OUT2,), dtype=jnp.float32) * 0.05
    out2 = jax.block_until_ready(
        preprocess_layer(x2, w2, b2, compute_dtype=jnp.bfloat16)
    )
    ref2 = jnp.maximum(
        jnp.dot(x2.astype(jnp.bfloat16), w2.astype(jnp.bfloat16),
                preferred_element_type=jnp.float32) + b2, 0.0)
    assert out2.shape == (B2, OUT2)
    assert jnp.allclose(out2, ref2, atol=2e-3, rtol=2e-3), "mismatch (bf16 tiled path)"

    # --- check 3: force the K-split fallback path (large-in_dim code path) ---
    B3, IN3, OUT3 = 64, 384, 256
    k3x, k3w, k3b = jax.random.split(jax.random.PRNGKey(2), 3)
    x3 = jax.random.normal(k3x, (B3, IN3), dtype=jnp.float32)
    w3 = jax.random.normal(k3w, (IN3, OUT3), dtype=jnp.float32) * 0.05
    b3 = jax.random.normal(k3b, (OUT3,), dtype=jnp.float32) * 0.05
    out3 = jax.block_until_ready(
        preprocess_layer(x3, w3, b3, tile_k=128, max_fused_k=128)
    )
    ref3 = jnp.maximum(x3 @ w3 + b3, 0.0)
    assert out3.shape == (B3, OUT3)
    assert jnp.allclose(out3, ref3, atol=1e-4, rtol=1e-4), "mismatch (K-split path)"

    print("KERNEL_OK")
</pallas_src>

<mosaic_0001>
module attributes {stable_mosaic.version = 11 : i64} {
  func.func @_fused_kernel(%arg0: i32, %arg1: i32, %arg2: memref<8x32xf32, #tpu.memory_space<vmem>>, %arg3: memref<32x128xf32, #tpu.memory_space<vmem>>, %arg4: memref<1x128xf32, #tpu.memory_space<vmem>>, %arg5: memref<8x128xf32, #tpu.memory_space<vmem>>) attributes {dimension_semantics = [#tpu.dimension_semantics<parallel>, #tpu.dimension_semantics<parallel>], iteration_bounds = array<i64: 1, 2>, scalar_prefetch = 0 : i64, scratch_operands = 0 : i64, tpu.core_type = #tpu.core_type<tc>, window_params = [{transform_indices = @transform_0, window_bounds = array<i64: 8, 32>}, {transform_indices = @transform_1, window_bounds = array<i64: 32, 128>}, {transform_indices = @transform_2, window_bounds = array<i64: 1, 128>}, {transform_indices = @transform_3, window_bounds = array<i64: 8, 128>}]} {
    %c0 = arith.constant 0 : index
    %c0_0 = arith.constant 0 : index
    %0 = vector.load %arg2[%c0, %c0_0] : memref<8x32xf32, #tpu.memory_space<vmem>>, vector<8x32xf32>
    %c0_1 = arith.constant 0 : index
    %c0_2 = arith.constant 0 : index
    %1 = vector.load %arg3[%c0_1, %c0_2] : memref<32x128xf32, #tpu.memory_space<vmem>>, vector<32x128xf32>
    %cst = arith.constant dense<0.000000e+00> : vector<8x128xf32>
    %2 = tpu.matmul %0, %1, %cst {dimension_numbers = #tpu.dot_dimension_numbers<[1], [0], [0], [1], [0, 0, 1, 1], [], []>} : vector<8x32xf32>, vector<32x128xf32>, vector<8x128xf32> -> vector<8x128xf32>
    %c0_3 = arith.constant 0 : index
    %c0_4 = arith.constant 0 : index
    %3 = vector.load %arg4[%c0_3, %c0_4] : memref<1x128xf32, #tpu.memory_space<vmem>>, vector<1x128xf32>
    %4 = vector.broadcast %3 : vector<1x128xf32> to vector<8x128xf32>
    %5 = arith.addf %2, %4 : vector<8x128xf32>
    %cst_5 = arith.constant 0.000000e+00 : f32
    %6 = vector.broadcast %cst_5 : f32 to vector<8x128xf32>
    %7 = arith.maximumf %5, %6 : vector<8x128xf32>
    %c0_6 = arith.constant 0 : index
    %c0_7 = arith.constant 0 : index
    %8 = vector.load %arg5[%c0_6, %c0_7] : memref<8x128xf32, #tpu.memory_space<vmem>>, vector<8x128xf32>
    tpu.vector_store %arg5[%c0_6, %c0_7], %7 {strides = array<i32>} : memref<8x128xf32, #tpu.memory_space<vmem>>, vector<8x128xf32>,
    return
  }
  func.func @transform_0(%arg0: i32, %arg1: i32) -> (i32, i32) {
    %c0_i32 = arith.constant 0 : i32
    %c0_i32_0 = arith.constant 0 : i32
    return %arg1, %c0_i32 : i32, i32
  }
  func.func @transform_1(%arg0: i32, %arg1: i32) -> (i32, i32) {
    %c0_i32 = arith.constant 0 : i32
    %c0_i32_0 = arith.constant 0 : i32
    return %c0_i32, %arg0 : i32, i32
  }
  func.func @transform_2(%arg0: i32, %arg1: i32) -> (i32, i32) {
    %c0_i32 = arith.constant 0 : i32
    %c0_i32_0 = arith.constant 0 : i32
    return %c0_i32, %arg0 : i32, i32
  }
  func.func @transform_3(%arg0: i32, %arg1: i32) -> (i32, i32) {
    %c0_i32 = arith.constant 0 : i32
    return %arg1, %arg0 : i32, i32
  }
}

</mosaic_0001>

<llo_original>
// kernel: preprocess_layer.1
$region0: #{preprocess_layer.1}
  #allocation0 [shape = 'u32[]', space=smem, size = 0x4, offset = 0x4, fixed_abs, tag = 'smem constant byte address 0x4 - core index']
  #allocation1 [shape = 'u32[72,128]{1,0:T(1,128)}', space=vmem, size = 0x9000, scoped, tag = 'internal scratch']
  %s0 = inlined_call_operand.vmem [shape: f32[16,32], index: 0, kind: input, shape index: {}]
  %s1 = inlined_call_operand.vmem [shape: f32[32,128], index: 1, kind: input, shape index: {}]
  %s2 = inlined_call_operand.vmem [shape: f32[1,128], index: 2, kind: input, shape index: {}]
  %s3 = inlined_call_operand.hbm [shape: f32[16,128], index: 3, kind: output, shape index: {}]
  %s4 = sld [smem:[#allocation0]]
  $region45: #{preprocess_layer.1} parent=0
    _
  %s6 = ssub.s32 1, %s4
  %s7 = scalar_select 0, %s6, %s4
  $region1: #{preprocess_layer.1} parent=0
    #allocation2 [shape = 'u8[8192]{0}', space=vmem, size = 0x2000, scoped, tag = 'output window, operand 0']
    #allocation3 [shape = 's32[2]{0}', space=sflag, size = 0x8, scoped, tag = 'scoped memory for preprocess_layer.1']
    %8 = vsyncpa [#allocation3], 0
    %s9 = scalar_lea.sflag [#allocation3], 1
    %10 = vsyncpa %s9, 0
    loop: start=0, step=1, limit=4
    $region2: #{preprocess_layer.1} parent=1 // loop_pre_header
      _
    $region3: #{preprocess_layer.1} parent=1 // loop_header
      %s12 = sphi 0, %s16
      %p13 = scmp.ge.s32.totalorder %s12, 4
      %s19 = sphi 0, %s31
      %s20 = sphi 0, %s27
      %s21 = sphi 0, %s19
      %s22 = sphi 0, %s20
      %s23 = sphi 0, %s21
      %s24 = sphi 0, %s22
      %s34 = sphi 0, %s36
      %s37 = sphi 0, %s34
      %s38 = sphi 0, %s37
      %s54 = sphi 0, %s38
      %s60 = sphi 0, %s62
      %s63 = sphi 0, %s60
      %s64 = sphi 0, %s63
      %s80 = sphi 0, %s64
      %s86 = sphi 0, %s88
      %s89 = sphi 0, %s86
      %s90 = sphi 0, %s89
      %s106 = sphi 0, %s90
      %s114 = sphi 0, %s116
      %s117 = sphi 0, %s114
      %s118 = sphi 0, %s117
      %s134 = sphi 0, %s118
    $region4: #{preprocess_layer.1} parent=1 // loop_header_branch
      %15 = sbr.rel (%p13) target = $region8
    $region5: #{preprocess_layer.1} parent=1 // loop_body
      %s17 = ssub.s32 %s12, 1
      %s18 = ssub.s32 %s12, 2
      %s25 = sadd.s32 1, %s20
      %p26 = scmp.ge.s32.totalorder %s25, 2
      %s27 = scalar_select %p26, 0, %s25
      %s28 = sadd.s32 1, %s19
      %s29 = scalar_select %p26, %s28, %s19
      %p30 = scmp.ge.s32.totalorder %s29, 1
      %s31 = scalar_select %p30, 0, %s29
      %s32 = ssub.s32 %s20, %s27
      %p33 = scmp.eq.s32.totalorder %s32, 0
      %s35 = sadd.s32 %s34, 1
      %s36 = scalar_select %p33, %s34, %s35
      %p39 = pneg %p33
      %p40 = scmp.eq.s32.totalorder %s12, 1
      %p41 = por %p39, %p40
      %p42 = scmp.ne.s32.totalorder %s34, %s37
      %p43 = scmp.eq.s32.totalorder %s12, 0
      %p44 = por %p42, %p43
      %p45 = scmp.ne.s32.totalorder %s34, %s37
      %p46 = scmp.eq.s32.totalorder %s17, 1
      %p47 = por %p45, %p46
      %p48 = scmp.ne.s32.totalorder %s37, %s38
      %p49 = scmp.eq.s32.totalorder %s17, 0
      %p50 = por %p48, %p49
      %p51 = scmp.ne.s32.totalorder %s37, %s38
      %p52 = scmp.eq.s32.totalorder %s18, 1
      %p53 = por %p51, %p52
      %p55 = scmp.ne.s32.totalorder %s38, %s54
      %p56 = scmp.eq.s32.totalorder %s18, 0
      %p57 = por %p55, %p56
      %s58 = ssub.s32 %s19, %s31
      %p59 = scmp.eq.s32.totalorder %s58, 0
      %s61 = sadd.s32 %s60, 1
      %s62 = scalar_select %p59, %s60, %s61
      %p65 = pneg %p59
      %p66 = scmp.eq.s32.totalorder %s12, 1
      %p67 = por %p65, %p66
      %p68 = scmp.ne.s32.totalorder %s60, %s63
      %p69 = scmp.eq.s32.totalorder %s12, 0
      %p70 = por %p68, %p69
      %p71 = scmp.ne.s32.totalorder %s60, %s63
      %p72 = scmp.eq.s32.totalorder %s17, 1
      %p73 = por %p71, %p72
      %p74 = scmp.ne.s32.totalorder %s63, %s64
      %p75 = scmp.eq.s32.totalorder %s17, 0
      %p76 = por %p74, %p75
      %p77 = scmp.ne.s32.totalorder %s63, %s64
      %p78 = scmp.eq.s32.totalorder %s18, 1
      %p79 = por %p77, %p78
      %p81 = scmp.ne.s32.totalorder %s64, %s80
      %p82 = scmp.eq.s32.totalorder %s18, 0
      %p83 = por %p81, %p82
      %s84 = ssub.s32 %s19, %s31
      %p85 = scmp.eq.s32.totalorder %s84, 0
      %s87 = sadd.s32 %s86, 1
      %s88 = scalar_select %p85, %s86, %s87
      %p91 = pneg %p85
      %p92 = scmp.eq.s32.totalorder %s12, 1
      %p93 = por %p91, %p92
      %p94 = scmp.ne.s32.totalorder %s86, %s89
      %p95 = scmp.eq.s32.totalorder %s12, 0
      %p96 = por %p94, %p95
      %p97 = scmp.ne.s32.totalorder %s86, %s89
      %p98 = scmp.eq.s32.totalorder %s17, 1
      %p99 = por %p97, %p98
      %p100 = scmp.ne.s32.totalorder %s89, %s90
      %p101 = scmp.eq.s32.totalorder %s17, 0
      %p102 = por %p100, %p101
      %p103 = scmp.ne.s32.totalorder %s89, %s90
      %p104 = scmp.eq.s32.totalorder %s18, 1
      %p105 = por %p103, %p104
      %p107 = scmp.ne.s32.totalorder %s90, %s106
      %p108 = scmp.eq.s32.totalorder %s18, 0
      %p109 = por %p107, %p108
      %s110 = ssub.s32 %s20, %s27
      %s111 = ssub.s32 %s19, %s31
      %s112 = sor.u32 %s110, %s111
      %p113 = scmp.eq.s32.totalorder %s112, 0
      %s115 = sadd.s32 %s114, 1
      %s116 = scalar_select %p113, %s114, %s115
      %p119 = pneg %p113
      %p120 = scmp.eq.s32.totalorder %s12, 1
      %p121 = por %p119, %p120
      %p122 = scmp.ne.s32.totalorder %s114, %s117
      %p123 = scmp.eq.s32.totalorder %s12, 0
      %p124 = por %p122, %p123
      %p125 = scmp.ne.s32.totalorder %s114, %s117
      %p126 = scmp.eq.s32.totalorder %s17, 1
      %p127 = por %p125, %p126
      %p128 = scmp.ne.s32.totalorder %s117, %s118
      %p129 = scmp.eq.s32.totalorder %s17, 0
      %p130 = por %p128, %p129
      %p131 = scmp.ne.s32.totalorder %s117, %s118
      %p132 = scmp.eq.s32.totalorder %s18, 1
      %p133 = por %p131, %p132
      %p135 = scmp.ne.s32.totalorder %s118, %s134
      %p136 = scmp.eq.s32.totalorder %s18, 0
      %p137 = por %p135, %p136
      %p138 = scmp.le.s32.totalorder 1, %s12
      %p139 = scmp.lt.s32.totalorder %s12, 3
      %p140 = pnand %p138, %p139
      %p141 = pneg %p140
      // Predicated region
      $region9: #{preprocess_layer.1} parent=5 // pred_check
        _
      $region10: #{preprocess_layer.1} parent=5 // pred_check_branch
        %143 = sbr.rel (%p140) target = $region12
      $region11: #{preprocess_layer.1} parent=5 // pred_region
        %s144 = ssub.s32 %s12, 1
        // Predicated region
        $region13: #{preprocess_layer.1} parent=11 // pred_check
          %p145 = pneg %p76
        $region14: #{preprocess_layer.1} parent=11 // pred_check_branch
          %147 = sbr.rel (%p145) target = $region16
        $region15: #{preprocess_layer.1} parent=11 // pred_region
          %p148 = scmp.lt.s32.totalorder %s21, 0
          %s149 = scalar_select %p148, %s21, 0
          %s150 = smul.addr %s149, 8
          %s151 = scalar_lea.vmem %s1, %s150
        $region16: #{preprocess_layer.1} parent=11 // pred_fallthru
          _
        // Predicated region
        $region17: #{preprocess_layer.1} parent=11 // pred_check
          %p152 = pneg %p102
        $region18: #{preprocess_layer.1} parent=11 // pred_check_branch
          %154 = sbr.rel (%p152) target = $region20
        $region19: #{preprocess_layer.1} parent=11 // pred_region
          %p155 = scmp.lt.s32.totalorder %s21, 0
          %s156 = scalar_select %p155, %s21, 0
          %s157 = scalar_lea.vmem %s2, %s156
        $region20: #{preprocess_layer.1} parent=11 // pred_fallthru
          _
      $region12: #{preprocess_layer.1} parent=5 // pred_fallthru
        _
      %p158 = scmp.lt.s32.totalorder %s12, 2
      // Predicated region
      $region21: #{preprocess_layer.1} parent=5 // pred_check
        %p159 = pneg %p158
      $region22: #{preprocess_layer.1} parent=5 // pred_check_branch
        %161 = sbr.rel (%p159) target = $region24
      $region23: #{preprocess_layer.1} parent=5 // pred_region
        // Predicated region
        $region25: #{preprocess_layer.1} parent=23 // pred_check
          %p162 = pneg %p44
        $region26: #{preprocess_layer.1} parent=23 // pred_check_branch
          %164 = sbr.rel (%p162) target = $region28
        $region27: #{preprocess_layer.1} parent=23 // pred_region
          %p165 = scmp.lt.s32.totalorder %s20, 1
          %s166 = scalar_select %p165, %s20, 1
          %s167 = smul.addr %s166, 8
          %s168 = scalar_lea.vmem %s0, %s167
        $region28: #{preprocess_layer.1} parent=23 // pred_fallthru
          _
      $region24: #{preprocess_layer.1} parent=5 // pred_fallthru
        _
      %p169 = scmp.le.s32.totalorder 1, %s12
      %p170 = scmp.lt.s32.totalorder %s12, 3
      %p171 = pnand %p169, %p170
      %p172 = pneg %p171
      // Predicated region
      $region29: #{preprocess_layer.1} parent=5 // pred_check
        _
      $region30: #{preprocess_layer.1} parent=5 // pred_check_branch
        %174 = sbr.rel (%p171) target = $region32
      $region31: #{preprocess_layer.1} parent=5 // pred_region
        %s175 = ssub.s32 %s12, 1
        %p176 = scmp.lt.s32.totalorder %s22, 1
        %s177 = scalar_select %p176, %s22, 1
        %s178 = smul.addr %s177, 8
        %s179 = scalar_lea.vmem %s0, %s178
        %p180 = pneg %p50
        %p181 = pneg %p47
        %p182 = scmp.lt.s32.totalorder %s21, 0
        %s183 = scalar_select %p182, %s21, 0
        %s184 = smul.addr %s183, 8
        %s185 = scalar_lea.vmem %s1, %s184
        %p186 = pneg %p76
        %p187 = pneg %p73
        %p188 = scmp.lt.s32.totalorder %s21, 0
        %s189 = scalar_select %p188, %s21, 0
        %s190 = scalar_lea.vmem %s2, %s189
        %p191 = pneg %p102
        %p192 = pneg %p99
        %p193 = pneg %p130
        %p194 = pneg %p127
        %s195 = sand.u32 %s117, 1
        %s196 = scalar_lea.sflag [#allocation3], %s195
        %s197 = sand.u32 %s117, 1
        %s198 = smul.addr %s197, 8
        %s199 = scalar_lea.vmem [#allocation2], %s198
        %p200 = scmp.lt.s32.totalorder %s22, 1
        %s201 = scalar_select %p200, %s22, 1
        %s202 = smul.addr %s201, 8
        %s203 = scalar_lea.vmem %s0, %s202
        %p204 = scmp.lt.s32.totalorder %s21, 0
        %s205 = scalar_select %p204, %s21, 0
        %s206 = smul.addr %s205, 8
        %s207 = scalar_lea.vmem %s1, %s206
        %p208 = scmp.lt.s32.totalorder %s21, 0
        %s209 = scalar_select %p208, %s21, 0
        %s210 = scalar_lea.vmem %s2, %s209
        %v211 = vld [vmem:[%s203] sm:$0xff]
        %v212 = vld [vmem:[%s207] sm:$0xff]
        %v213 = vld [vmem:[%s207 + $0x8] sm:$0xff]
        %v214 = vld [vmem:[%s207 + $0x10] sm:$0xff]
        %v215 = vld [vmem:[%s207 + $0x18] sm:$0xff]
        %v216 = vld [vmem:[%s210] sm:$0x1]
        %v218 = vperm.slane %v216, 0
        %vm220 = vcmask 261120
        %v222 = vsel %vm220, %v211, 0
        %224 = vmatpush.msra.mxu0 0.0
        %225 = vmatpush.msra.mxu0 0.0
        %226 = vmatpush.msra.mxu0 0.0
        %227 = vmatpush.msra.mxu0 0.0
        %228 = vmatpush.msra.mxu0 0.0
        %229 = vmatpush.msra.mxu0 0.0
        %230 = vmatpush.msra.mxu0 0.0
        %231 = vmatpush.msra.mxu0 0.0
        %232 = vmatpush.msra.mxu0 0.0
        %233 = vmatpush.msra.mxu0 0.0
        %234 = vmatpush.msra.mxu0 0.0
        %235 = vmatpush.msra.mxu0 0.0
        %236 = vmatpush.msra.mxu0 %v215
        %237 = vmatpush.msra.mxu0 %v214
        %238 = vmatpush.msra.mxu0 %v213
        %239 = vmatpush.msra.mxu0 %v212
        %240 = vmatmul.f32.gmra.mxu0 %v222
        %v241 = vpop.f32.mrf.mxu0
        %v242 = vadd.f32 %v218, %v241
        %243 = vdwg.mxu0
        %v244 = vmax.f32 %v242, 0.0
        %245 = vst [vmem:[%s199] sm:$0xff] %v244
        %s246 = sand.u32 %s117, 1
        %s247 = scalar_lea.sflag [#allocation3], %s246
        %s248 = sand.u32 %s117, 1
        %s249 = smul.addr %s248, 8
        %s250 = scalar_lea.vmem [#allocation2], %s249
        // Predicated region
        $region33: #{preprocess_layer.1} parent=31 // pred_check
          %p251 = pneg %p127
        $region34: #{preprocess_layer.1} parent=31 // pred_check_branch
          %253 = sbr.rel (%p251) target = $region36
        $region35: #{preprocess_layer.1} parent=31 // pred_region
          %255 = vsyncadd %s247, 0
          %s256 = sadd.s32 %s21, %s22
          %s257 = smul.addr %s256, 8
          %s258 = scalar_lea.hbm %s3, %s257
          %s260 = sshll.u32 %s250, 4
          %s261 = int_to_ptr.vmem [resolvable:$true] %s260
          %s262 = sshll.u32 %s258, 4
          %s263 = int_to_ptr.hbm [resolvable:$true] %s262
          %265 = dma.vmem_to_hbm [thread:$0]  %s261, 128, %s263, %s247
        $region36: #{preprocess_layer.1} parent=31 // pred_fallthru
          _
      $region32: #{preprocess_layer.1} parent=5 // pred_fallthru
        _
      %p266 = scmp.le.s32.totalorder 2, %s12
      // Predicated region
      $region37: #{preprocess_layer.1} parent=5 // pred_check
        %p267 = pneg %p266
      $region38: #{preprocess_layer.1} parent=5 // pred_check_branch
        %269 = sbr.rel (%p267) target = $region40
      $region39: #{preprocess_layer.1} parent=5 // pred_region
        %s270 = ssub.s32 %s12, 2
        // Predicated region
        $region41: #{preprocess_layer.1} parent=39 // pred_check
          %p271 = pneg %p133
        $region42: #{preprocess_layer.1} parent=39 // pred_check_branch
          %273 = sbr.rel (%p271) target = $region44
        $region43: #{preprocess_layer.1} parent=39 // pred_region
          %s274 = sand.u32 %s118, 1
          %s275 = scalar_lea.sflag [#allocation3], %s274
          %s276 = sand.u32 %s118, 1
          %s277 = smul.addr %s276, 8
          %s278 = scalar_lea.vmem [#allocation2], %s277
          %280 = dma.done %s275, 128
        $region44: #{preprocess_layer.1} parent=39 // pred_fallthru
          _
      $region40: #{preprocess_layer.1} parent=5 // pred_fallthru
        _
    $region6: #{preprocess_layer.1} parent=1 // loop_footer
      %s16 = sadd.s32 1, %s12
    $region7: #{preprocess_layer.1} parent=1 // loop_footer_branch
      %11 = sbr.rel target = $region3
    $region8: #{preprocess_layer.1} parent=1 // loop_exit
      _
    %281 = vsyncpa [#allocation3], 1
    %s282 = scalar_lea.sflag [#allocation3], 1
    %283 = vsyncpa %s282, 1

</llo_original>
